<compile_context>
chip_gen: v7x
topology: tpu7x:2x2x1
jax: 0.10.0
libtpu: 0.0.40
codegen_flags: <defaults>
</compile_context>

<pallas_src>
import functools

import jax
import jax.numpy as jnp
from jax.experimental import pallas as pl
from jax.experimental.pallas import tpu as pltpu


def _round_up(x: int, m: int) -> int:
    return (x + m - 1) // m * m


def _conv_bn_relu_kernel(p_ref, w_ref, g_ref, beta_ref, o_ref, sum_ref, sq_ref, *,
                         m_valid: int, tm: int, n_tiles: int, eps: float):
    i = pl.program_id(0)

    @pl.when(i == 0)
    def _():
        sum_ref[...] = jnp.zeros_like(sum_ref)
        sq_ref[...] = jnp.zeros_like(sq_ref)

    # Fused im2col-GEMM tile on the MXU: (co_p, ck_p) @ (ck_p, tm); bf16 operands, f32 acc.
    y = jnp.dot(w_ref[...], p_ref[...], preferred_element_type=jnp.float32)

    start = pl.multiple_of(i * tm, tm)          # lane-aligned slab store
    o_ref[:, pl.ds(start, tm)] = y              # output block stays VMEM-resident

    # Per-tile BatchNorm statistics; padded columns are exactly zero (no bias added),
    # so they contribute nothing and no mask is needed.
    sum_ref[...] += jnp.sum(y, axis=1, keepdims=True)
    sq_ref[...] += jnp.sum(y * y, axis=1, keepdims=True)

    # Finalize on the last grid step: fold BN (biased batch variance, eps) + affine into a
    # per-channel scale/shift, then apply scale/shift + ReLU tile-by-tile (never load the
    # whole resident output at once).
    @pl.when(i == pl.num_programs(0) - 1)
    def _():
        inv_m = 1.0 / m_valid
        mu = sum_ref[...] * inv_m                                 # (co_p, 1)
        var = jnp.maximum(sq_ref[...] * inv_m - mu * mu, 0.0)     # biased variance
        scale = g_ref[...] * jax.lax.rsqrt(var + eps)
        shift = beta_ref[...] - mu * scale

        def apply(j, carry):
            s = pl.multiple_of(j * tm, tm)
            t = o_ref[:, pl.ds(s, tm)]
            o_ref[:, pl.ds(s, tm)] = jnp.maximum(t * scale + shift, 0.0)
            return carry

        jax.lax.fori_loop(0, n_tiles, apply, 0, unroll=n_tiles <= 8)


@functools.partial(jax.jit, static_argnames=("ker", "eps", "tm"))
def in_conv2d_forward(x, w, gamma, beta, *, ker=(2, 31), eps=1e-5, tm=512):
    kh, kw = ker
    pad_w = (kw - 1) // 2
    n, c_in, h, w_in = x.shape
    c_out = w.shape[0]
    h_out = h - kh + 1                           # no padding along H (pad=(0, (kw-1)//2))
    w_out = w_in + 2 * pad_w - kw + 1
    ck = c_in * kh * kw
    m = n * h_out * w_out

    if tm % 128 != 0:
        raise ValueError("tm must be a multiple of 128 (TPU lane width)")
    tm = min(tm, _round_up(m, 128))              # don't over-pad tiny problems

    # ---- im2col in the wrapper (layout plumbing; heavy math stays in the kernel) ----
    # TODO(synk): for large inputs, build patch tiles in-kernel from raw x rows instead of
    # materializing the KH*KW-expanded im2col matrix in HBM.
    xp = jnp.pad(x, ((0, 0), (0, 0), (0, 0), (pad_w, pad_w)))
    cols = [xp[:, :, ikh:ikh + h_out, ikw:ikw + w_out]
            for ikh in range(kh) for ikw in range(kw)]
    patches = jnp.stack(cols, axis=2)                    # (N, C_in, KH*KW, H_out, W_out)
    patches = patches.transpose(1, 2, 0, 3, 4).reshape(ck, m)

    # Pad to MXU/lane-friendly shapes; batch+spatial folded into one lane-dense axis.
    ck_p = _round_up(ck, 16)
    co_p = _round_up(c_out, 8)
    m_p = _round_up(m, tm)
    n_tiles = m_p // tm

    patches = jnp.pad(patches, ((0, ck_p - ck), (0, m_p - m))).astype(jnp.bfloat16)
    w2 = jnp.pad(w.reshape(c_out, ck),
                 ((0, co_p - c_out), (0, ck_p - ck))).astype(jnp.bfloat16)
    g2 = jnp.pad(gamma, (0, co_p - c_out)).reshape(co_p, 1)
    be2 = jnp.pad(beta, (0, co_p - c_out)).reshape(co_p, 1)

    # VMEM budget: resident f32 output + double-buffered bf16 patch tiles + weights/params
    # (+ slack for lane padding of the small (co_p, 1) buffers).
    vmem_needed = (co_p * m_p * 4 + 2 * ck_p * tm * 2 + co_p * ck_p * 2
                   + 6 * co_p * 128 * 4 + (1 << 20))
    budget = 44 * (1 << 20)                      # headroom inside the 48 MiB cap below
    if vmem_needed > budget:
        raise ValueError(
            f"resident-output InConv2d kernel needs ~{vmem_needed >> 20} MiB VMEM "
            f"(> {budget >> 20} MiB); use a two-pass streamed layout for this M")

    kernel = functools.partial(_conv_bn_relu_kernel, m_valid=m, tm=tm,
                               n_tiles=n_tiles, eps=eps)
    y = pl.pallas_call(
        kernel,
        out_shape=jax.ShapeDtypeStruct((co_p, m_p), jnp.float32),
        grid_spec=pltpu.PrefetchScalarGridSpec(
            num_scalar_prefetch=0,
            grid=(n_tiles,),
            in_specs=[pl.BlockSpec((ck_p, tm), lambda i: (0, i)),    # streamed patch tiles
                      pl.BlockSpec((co_p, ck_p), lambda i: (0, 0)),  # resident weights
                      pl.BlockSpec((co_p, 1), lambda i: (0, 0)),     # gamma
                      pl.BlockSpec((co_p, 1), lambda i: (0, 0))],    # beta
            out_specs=pl.BlockSpec((co_p, m_p), lambda i: (0, 0)),   # resident output
            scratch_shapes=[pltpu.VMEM((co_p, 1), jnp.float32),      # per-channel sum
                            pltpu.VMEM((co_p, 1), jnp.float32)],     # per-channel sum sq
        ),
        compiler_params=pltpu.CompilerParams(
            dimension_semantics=("arbitrary",),   # resident accumulator => sequential grid
            vmem_limit_bytes=48 * 1024 * 1024,    # explicit cap, v7x (64 MiB physical) safe
        ),
    )(patches, w2, g2, be2)

    y = y[:c_out, :m].reshape(c_out, n, h_out, w_out)
    return jnp.transpose(y, (1, 0, 2, 3))        # back to NCHW


class InConv2dPallas:
    """JAX/Pallas port of the PyTorch InConv2d module (deterministic init)."""

    def __init__(self, in_ch=1, out_ch=64, ker=(2, 31), key=None):
        if key is None:
            key = jax.random.PRNGKey(0)
        kh, kw = ker
        k1, k2 = jax.random.split(key)
        s = 1.0 / (in_ch * kh * kw) ** 0.5       # PyTorch Conv2d default init bound
        self.w = jax.random.uniform(k1, (out_ch, in_ch, kh, kw), jnp.float32, -s, s)
        self.b = jax.random.uniform(k2, (out_ch,), jnp.float32, -s, s)
        self.gamma = jnp.ones((out_ch,), jnp.float32)    # BatchNorm2d affine at init
        self.beta = jnp.zeros((out_ch,), jnp.float32)
        self.ker = ker

    def __call__(self, x):
        # Conv bias is intentionally not passed: training-mode BatchNorm subtracts the
        # per-channel batch mean, so the bias cancels exactly in the forward output.
        return in_conv2d_forward(x, self.w, self.gamma, self.beta, ker=self.ker)


# ---- pure-JAX reference (same math, includes the bias, no Pallas) for a sanity check ----
def _ref_forward(x, w, b, gamma, beta, ker=(2, 31), eps=1e-5):
    kh, kw = ker
    pad_w = (kw - 1) // 2
    y = jax.lax.conv_general_dilated(
        x, w, window_strides=(1, 1), padding=((0, 0), (pad_w, pad_w)),
        dimension_numbers=("NCHW", "OIHW", "NCHW"))
    y = y + b[None, :, None, None]
    mu = y.mean(axis=(0, 2, 3), keepdims=True)
    var = ((y - mu) ** 2).mean(axis=(0, 2, 3), keepdims=True)
    y = (y - mu) * jax.lax.rsqrt(var + eps)
    y = y * gamma[None, :, None, None] + beta[None, :, None, None]
    return jnp.maximum(y, 0.0)


if __name__ == "__main__":
    key = jax.random.PRNGKey(0)
    k_x, k_p = jax.random.split(key)

    N, IN_CH, OUT_CH, H, W = 2, 1, 64, 16, 16
    x = jax.random.normal(k_x, (N, IN_CH, H, W), jnp.float32)

    model = InConv2dPallas(IN_CH, OUT_CH, ker=(2, 31), key=k_p)

    y = jax.block_until_ready(model(x))
    assert y.shape == (N, OUT_CH, H - 1, W), y.shape

    y_ref = jax.block_until_ready(
        _ref_forward(x, model.w, model.b, model.gamma, model.beta, ker=model.ker))
    max_err = float(jnp.max(jnp.abs(y - y_ref)))
    assert jnp.allclose(y, y_ref, atol=2e-2, rtol=2e-2), max_err

    print("KERNEL_OK")
</pallas_src>

<mosaic_0001>
module attributes {stable_mosaic.version = 11 : i64} {
  func.func @_conv_bn_relu_kernel(%arg0: i32, %arg1: memref<64x512xbf16, #tpu.memory_space<vmem>>, %arg2: memref<64x64xbf16, #tpu.memory_space<vmem>>, %arg3: memref<64x1xf32, #tpu.memory_space<vmem>>, %arg4: memref<64x1xf32, #tpu.memory_space<vmem>>, %arg5: memref<64x512xf32, #tpu.memory_space<vmem>>, %arg6: memref<64x1xf32, #tpu.memory_space<vmem>>, %arg7: memref<64x1xf32, #tpu.memory_space<vmem>>) attributes {dimension_semantics = [#tpu.dimension_semantics<arbitrary>], iteration_bounds = array<i64: 1>, scalar_prefetch = 0 : i64, scratch_operands = 2 : i64, tpu.core_type = #tpu.core_type<tc>, window_params = [{transform_indices = @transform_0, window_bounds = array<i64: 64, 512>}, {pipeline_mode = #tpu.pipeline_mode<synchronous>, transform_indices = @transform_1, window_bounds = array<i64: 64, 64>}, {pipeline_mode = #tpu.pipeline_mode<synchronous>, transform_indices = @transform_2, window_bounds = array<i64: 64, 1>}, {pipeline_mode = #tpu.pipeline_mode<synchronous>, transform_indices = @transform_3, window_bounds = array<i64: 64, 1>}, {pipeline_mode = #tpu.pipeline_mode<synchronous>, transform_indices = @transform_4, window_bounds = array<i64: 64, 512>}]} {
    %c0_i32 = arith.constant 0 : i32
    %0 = arith.cmpi eq, %arg0, %c0_i32 : i32
    %1 = arith.extui %0 : i1 to i32
    %c0_i32_0 = arith.constant 0 : i32
    %2 = arith.cmpi ne, %1, %c0_i32_0 : i32
    scf.if %2 {
      %cst_17 = arith.constant 0.000000e+00 : f32
      %24 = vector.broadcast %cst_17 : f32 to vector<64x1xf32>
      %c0_18 = arith.constant 0 : index
      %c0_19 = arith.constant 0 : index
      %25 = vector.load %arg6[%c0_18, %c0_19] : memref<64x1xf32, #tpu.memory_space<vmem>>, vector<64x1xf32>
      tpu.vector_store %arg6[%c0_18, %c0_19], %24 {strides = array<i32>} : memref<64x1xf32, #tpu.memory_space<vmem>>, vector<64x1xf32>,
      %cst_20 = arith.constant 0.000000e+00 : f32
      %26 = vector.broadcast %cst_20 : f32 to vector<64x1xf32>
      %c0_21 = arith.constant 0 : index
      %c0_22 = arith.constant 0 : index
      %27 = vector.load %arg7[%c0_21, %c0_22] : memref<64x1xf32, #tpu.memory_space<vmem>>, vector<64x1xf32>
      tpu.vector_store %arg7[%c0_21, %c0_22], %26 {strides = array<i32>} : memref<64x1xf32, #tpu.memory_space<vmem>>, vector<64x1xf32>,
    } else {
    }
    %c0 = arith.constant 0 : index
    %c0_1 = arith.constant 0 : index
    %3 = vector.load %arg2[%c0, %c0_1] : memref<64x64xbf16, #tpu.memory_space<vmem>>, vector<64x64xbf16>
    %c0_2 = arith.constant 0 : index
    %c0_3 = arith.constant 0 : index
    %4 = vector.load %arg1[%c0_2, %c0_3] : memref<64x512xbf16, #tpu.memory_space<vmem>>, vector<64x512xbf16>
    %cst = arith.constant dense<0.000000e+00> : vector<64x512xf32>
    %5 = tpu.matmul %3, %4, %cst {dimension_numbers = #tpu.dot_dimension_numbers<[1], [0], [0], [1], [0, 0, 1, 1], [], []>} : vector<64x64xbf16>, vector<64x512xbf16>, vector<64x512xf32> -> vector<64x512xf32>
    %c512_i32 = arith.constant 512 : i32
    %6 = arith.muli %arg0, %c512_i32 : i32
    %7 = tpu.assume_multiple %6, 512 : i32
    %c0_4 = arith.constant 0 : index
    %8 = arith.index_cast %7 : i32 to index
    %9 = vector.load %arg5[%c0_4, %8] : memref<64x512xf32, #tpu.memory_space<vmem>>, vector<64x512xf32>
    tpu.vector_store %arg5[%c0_4, %8], %5 {strides = array<i32>} : memref<64x512xf32, #tpu.memory_space<vmem>>, vector<64x512xf32>,
    %c0_5 = arith.constant 0 : index
    %c0_6 = arith.constant 0 : index
    %10 = vector.load %arg6[%c0_5, %c0_6] : memref<64x1xf32, #tpu.memory_space<vmem>>, vector<64x1xf32>
    %cst_7 = arith.constant dense<0.000000e+00> : vector<64xf32>
    %11 = vector.multi_reduction <add>, %5, %cst_7 [1] : vector<64x512xf32> to vector<64xf32>
    %12 = vector.shape_cast %11 : vector<64xf32> to vector<64x1xf32>
    %13 = arith.addf %10, %12 : vector<64x1xf32>
    %c0_8 = arith.constant 0 : index
    %c0_9 = arith.constant 0 : index
    %14 = vector.load %arg6[%c0_8, %c0_9] : memref<64x1xf32, #tpu.memory_space<vmem>>, vector<64x1xf32>
    tpu.vector_store %arg6[%c0_8, %c0_9], %13 {strides = array<i32>} : memref<64x1xf32, #tpu.memory_space<vmem>>, vector<64x1xf32>,
    %c0_10 = arith.constant 0 : index
    %c0_11 = arith.constant 0 : index
    %15 = vector.load %arg7[%c0_10, %c0_11] : memref<64x1xf32, #tpu.memory_space<vmem>>, vector<64x1xf32>
    %16 = arith.mulf %5, %5 : vector<64x512xf32>
    %cst_12 = arith.constant dense<0.000000e+00> : vector<64xf32>
    %17 = vector.multi_reduction <add>, %16, %cst_12 [1] : vector<64x512xf32> to vector<64xf32>
    %18 = vector.shape_cast %17 : vector<64xf32> to vector<64x1xf32>
    %19 = arith.addf %15, %18 : vector<64x1xf32>
    %c0_13 = arith.constant 0 : index
    %c0_14 = arith.constant 0 : index
    %20 = vector.load %arg7[%c0_13, %c0_14] : memref<64x1xf32, #tpu.memory_space<vmem>>, vector<64x1xf32>
    tpu.vector_store %arg7[%c0_13, %c0_14], %19 {strides = array<i32>} : memref<64x1xf32, #tpu.memory_space<vmem>>, vector<64x1xf32>,
    %c0_i32_15 = arith.constant 0 : i32
    %21 = arith.cmpi eq, %arg0, %c0_i32_15 : i32
    %22 = arith.extui %21 : i1 to i32
    %c0_i32_16 = arith.constant 0 : i32
    %23 = arith.cmpi ne, %22, %c0_i32_16 : i32
    scf.if %23 {
      %c0_17 = arith.constant 0 : index
      %c0_18 = arith.constant 0 : index
      %24 = vector.load %arg6[%c0_17, %c0_18] : memref<64x1xf32, #tpu.memory_space<vmem>>, vector<64x1xf32>
      %cst_19 = arith.constant 0.00208333344 : f32
      %25 = vector.broadcast %cst_19 : f32 to vector<64x1xf32>
      %26 = arith.mulf %24, %25 : vector<64x1xf32>
      %c0_20 = arith.constant 0 : index
      %c0_21 = arith.constant 0 : index
      %27 = vector.load %arg7[%c0_20, %c0_21] : memref<64x1xf32, #tpu.memory_space<vmem>>, vector<64x1xf32>
      %cst_22 = arith.constant 0.00208333344 : f32
      %28 = vector.broadcast %cst_22 : f32 to vector<64x1xf32>
      %29 = arith.mulf %27, %28 : vector<64x1xf32>
      %30 = arith.mulf %26, %26 : vector<64x1xf32>
      %31 = arith.subf %29, %30 : vector<64x1xf32>
      %cst_23 = arith.constant 0.000000e+00 : f32
      %32 = vector.broadcast %cst_23 : f32 to vector<64x1xf32>
      %33 = arith.maximumf %31, %32 : vector<64x1xf32>
      %c0_24 = arith.constant 0 : index
      %c0_25 = arith.constant 0 : index
      %34 = vector.load %arg3[%c0_24, %c0_25] : memref<64x1xf32, #tpu.memory_space<vmem>>, vector<64x1xf32>
      %cst_26 = arith.constant 9.99999974E-6 : f32
      %35 = vector.broadcast %cst_26 : f32 to vector<64x1xf32>
      %36 = arith.addf %33, %35 : vector<64x1xf32>
      %37 = math.rsqrt %36 : vector<64x1xf32>
      %38 = arith.mulf %34, %37 : vector<64x1xf32>
      %c0_27 = arith.constant 0 : index
      %c0_28 = arith.constant 0 : index
      %39 = vector.load %arg4[%c0_27, %c0_28] : memref<64x1xf32, #tpu.memory_space<vmem>>, vector<64x1xf32>
      %40 = arith.mulf %26, %38 : vector<64x1xf32>
      %41 = arith.subf %39, %40 : vector<64x1xf32>
      %c0_i32_29 = arith.constant 0 : i32
      %c512_i32_30 = arith.constant 512 : i32
      %42 = arith.muli %c0_i32_29, %c512_i32_30 : i32
      %43 = tpu.assume_multiple %42, 512 : i32
      %c0_31 = arith.constant 0 : index
      %44 = arith.index_cast %43 : i32 to index
      %45 = vector.load %arg5[%c0_31, %44] : memref<64x512xf32, #tpu.memory_space<vmem>>, vector<64x512xf32>
      %46 = vector.broadcast %38 : vector<64x1xf32> to vector<64x512xf32>
      %47 = arith.mulf %45, %46 : vector<64x512xf32>
      %48 = vector.broadcast %41 : vector<64x1xf32> to vector<64x512xf32>
      %49 = arith.addf %47, %48 : vector<64x512xf32>
      %cst_32 = arith.constant 0.000000e+00 : f32
      %50 = vector.broadcast %cst_32 : f32 to vector<64x512xf32>
      %51 = arith.maximumf %49, %50 : vector<64x512xf32>
      %c0_33 = arith.constant 0 : index
      %52 = arith.index_cast %43 : i32 to index
      %53 = vector.load %arg5[%c0_33, %52] : memref<64x512xf32, #tpu.memory_space<vmem>>, vector<64x512xf32>
      tpu.vector_store %arg5[%c0_33, %52], %51 {strides = array<i32>} : memref<64x512xf32, #tpu.memory_space<vmem>>, vector<64x512xf32>,
      %c1_i32 = arith.constant 1 : i32
    } else {
    }
    return
  }
  func.func @transform_0(%arg0: i32) -> (i32, i32) {
    %c0_i32 = arith.constant 0 : i32
    %c0_i32_0 = arith.constant 0 : i32
    return %c0_i32, %arg0 : i32, i32
  }
  func.func @transform_1(%arg0: i32) -> (i32, i32) {
    %c0_i32 = arith.constant 0 : i32
    %c0_i32_0 = arith.constant 0 : i32
    %c0_i32_1 = arith.constant 0 : i32
    return %c0_i32, %c0_i32_0 : i32, i32
  }
  func.func @transform_2(%arg0: i32) -> (i32, i32) {
    %c0_i32 = arith.constant 0 : i32
    %c0_i32_0 = arith.constant 0 : i32
    %c0_i32_1 = arith.constant 0 : i32
    return %c0_i32, %c0_i32_0 : i32, i32
  }
  func.func @transform_3(%arg0: i32) -> (i32, i32) {
    %c0_i32 = arith.constant 0 : i32
    %c0_i32_0 = arith.constant 0 : i32
    %c0_i32_1 = arith.constant 0 : i32
    return %c0_i32, %c0_i32_0 : i32, i32
  }
  func.func @transform_4(%arg0: i32) -> (i32, i32) {
    %c0_i32 = arith.constant 0 : i32
    %c0_i32_0 = arith.constant 0 : i32
    %c0_i32_1 = arith.constant 0 : i32
    return %c0_i32, %c0_i32_0 : i32, i32
  }
}

</mosaic_0001>

<llo_original>
// kernel: in_conv2d_forward.1
$region0: #{in_conv2d_forward.1}
  #allocation0 [shape = 'u32[]', space=smem, size = 0x4, offset = 0x4, fixed_abs, tag = 'smem constant byte address 0x4 - core index']
  #allocation1 [shape = 'u32[144,128]{1,0:T(1,128)}', space=vmem, size = 0x12000, scoped, tag = 'internal scratch']
  #allocation2 [shape = 'f32[64,1]{1,0:T(8,128)}', space=vmem, size = 0x8000, scoped, tag = 'scratch operand']
  #allocation3 [shape = 'f32[64,1]{1,0:T(8,128)}', space=vmem, size = 0x8000, scoped, tag = 'scratch operand']
  %s0 = inlined_call_operand.vmem [shape: bf16[64,512], index: 0, kind: input, shape index: {}]
  %s1 = inlined_call_operand.vmem [shape: bf16[64,64], index: 1, kind: input, shape index: {}]
  %s2 = inlined_call_operand.vmem [shape: f32[64,1], index: 2, kind: input, shape index: {}]
  %s3 = inlined_call_operand.vmem [shape: f32[64,1], index: 3, kind: input, shape index: {}]
  %s4 = inlined_call_operand.vmem [shape: f32[64,512], index: 4, kind: output, shape index: {}]
  %s5 = sld [smem:[#allocation0]]
  $region34: #{in_conv2d_forward.1} parent=0
    _
  %s7 = ssub.s32 1, %s5
  %s8 = scalar_select 0, %s7, %s5
  // Predicated region
  $region2: #{in_conv2d_forward.1} parent=0 // pred_check
    _
  $region3: #{in_conv2d_forward.1} parent=0 // pred_check_branch
    %10 = sbr.rel (0) target = $region5
  $region4: #{in_conv2d_forward.1} parent=0 // pred_region
    _
  $region5: #{in_conv2d_forward.1} parent=0 // pred_fallthru
    _
  // Predicated region
  $region6: #{in_conv2d_forward.1} parent=0 // pred_check
    _
  $region7: #{in_conv2d_forward.1} parent=0 // pred_check_branch
    %12 = sbr.rel (0) target = $region9
  $region8: #{in_conv2d_forward.1} parent=0 // pred_region
    _
  $region9: #{in_conv2d_forward.1} parent=0 // pred_fallthru
    _
  // Predicated region
  $region10: #{in_conv2d_forward.1} parent=0 // pred_check
    _
  $region11: #{in_conv2d_forward.1} parent=0 // pred_check_branch
    %14 = sbr.rel (0) target = $region13
  $region12: #{in_conv2d_forward.1} parent=0 // pred_region
    _
  $region13: #{in_conv2d_forward.1} parent=0 // pred_fallthru
    _
  // Predicated region
  $region14: #{in_conv2d_forward.1} parent=0 // pred_check
    _
  $region15: #{in_conv2d_forward.1} parent=0 // pred_check_branch
    %16 = sbr.rel (0) target = $region17
  $region16: #{in_conv2d_forward.1} parent=0 // pred_region
    _
  $region17: #{in_conv2d_forward.1} parent=0 // pred_fallthru
    _
  %p18 = scmp.eq.s32.totalorder 0, 0
  // Predicated region
  $region18: #{in_conv2d_forward.1} parent=0 // pred_check
    %p19 = pneg %p18
  $region19: #{in_conv2d_forward.1} parent=0 // pred_check_branch
    %21 = sbr.rel (%p19) target = $region21
  $region20: #{in_conv2d_forward.1} parent=0 // pred_region
    %vm22 = vcmask 7168
    %23 = vst.msk [vmem:[#allocation2] sm:$0xff] %vm22, 0.0
    %24 = vst.msk [vmem:[#allocation2 + $0x8] sm:$0xff] %vm22, 0.0
    %25 = vst.msk [vmem:[#allocation2 + $0x10] sm:$0xff] %vm22, 0.0
    %26 = vst.msk [vmem:[#allocation2 + $0x18] sm:$0xff] %vm22, 0.0
    %27 = vst.msk [vmem:[#allocation2 + $0x20] sm:$0xff] %vm22, 0.0
    %28 = vst.msk [vmem:[#allocation2 + $0x28] sm:$0xff] %vm22, 0.0
    %29 = vst.msk [vmem:[#allocation2 + $0x30] sm:$0xff] %vm22, 0.0
    %30 = vst.msk [vmem:[#allocation2 + $0x38] sm:$0xff] %vm22, 0.0
    %31 = vst.msk [vmem:[#allocation3] sm:$0xff] %vm22, 0.0
    %32 = vst.msk [vmem:[#allocation3 + $0x8] sm:$0xff] %vm22, 0.0
    %33 = vst.msk [vmem:[#allocation3 + $0x10] sm:$0xff] %vm22, 0.0
    %34 = vst.msk [vmem:[#allocation3 + $0x18] sm:$0xff] %vm22, 0.0
    %35 = vst.msk [vmem:[#allocation3 + $0x20] sm:$0xff] %vm22, 0.0
    %36 = vst.msk [vmem:[#allocation3 + $0x28] sm:$0xff] %vm22, 0.0
    %37 = vst.msk [vmem:[#allocation3 + $0x30] sm:$0xff] %vm22, 0.0
    %38 = vst.msk [vmem:[#allocation3 + $0x38] sm:$0xff] %vm22, 0.0
  $region21: #{in_conv2d_forward.1} parent=0 // pred_fallthru
    _
  %v39 = vld [vmem:[%s1] sm:$0xf]
  %v40 = vld [vmem:[%s1 + $0x4] sm:$0xf]
  %v41 = vld [vmem:[%s1 + $0x8] sm:$0xf]
  %v42 = vld [vmem:[%s1 + $0xc] sm:$0xf]
  %v43 = vld [vmem:[%s1 + $0x10] sm:$0xf]
  %v44 = vld [vmem:[%s1 + $0x14] sm:$0xf]
  %v45 = vld [vmem:[%s1 + $0x18] sm:$0xf]
  %v46 = vld [vmem:[%s1 + $0x1c] sm:$0xf]
  %v47 = vld [vmem:[%s0] sm:$0xff]
  %v48 = vld [vmem:[%s0 + $0x8] sm:$0xff]
  %v49 = vld [vmem:[%s0 + $0x10] sm:$0xff]
  %v50 = vld [vmem:[%s0 + $0x18] sm:$0xff]
  %v51 = vld [vmem:[%s0 + $0x20] sm:$0xff]
  %v52 = vld [vmem:[%s0 + $0x28] sm:$0xff]
  %v53 = vld [vmem:[%s0 + $0x30] sm:$0xff]
  %v54 = vld [vmem:[%s0 + $0x38] sm:$0xff]
  %v55 = vld [vmem:[%s0 + $0x40] sm:$0xff]
  %v56 = vld [vmem:[%s0 + $0x48] sm:$0xff]
  %v57 = vld [vmem:[%s0 + $0x50] sm:$0xff]
  %v58 = vld [vmem:[%s0 + $0x58] sm:$0xff]
  %v59 = vld [vmem:[%s0 + $0x60] sm:$0xff]
  %v60 = vld [vmem:[%s0 + $0x68] sm:$0xff]
  %v61 = vld [vmem:[%s0 + $0x70] sm:$0xff]
  %v62 = vld [vmem:[%s0 + $0x78] sm:$0xff]
  %v71 = vunpack.c.l.b16 %v39
  %v72 = vunpack.c.l.b16 %v40
  %v73 = vunpack.c.l.b16 %v41
  %v74 = vunpack.c.l.b16 %v42
  %v75 = vunpack.c.l.b16 %v43
  %v76 = vunpack.c.l.b16 %v44
  %v77 = vunpack.c.l.b16 %v45
  %v78 = vunpack.c.l.b16 %v46
  %v79 = vpack.c.b16 %v72, %v71
  %v80 = vpack.c.b16 %v74, %v73
  %v81 = vpack.c.b16 %v76, %v75
  %v82 = vpack.c.b16 %v78, %v77
  %v99 = vunpack.c.l.b16 %v47
  %v100 = vunpack.c.h.b16 %v47
  %v101 = vunpack.c.l.b16 %v48
  %v102 = vunpack.c.h.b16 %v48
  %v103 = vunpack.c.l.b16 %v49
  %v104 = vunpack.c.h.b16 %v49
  %v105 = vunpack.c.l.b16 %v50
  %v106 = vunpack.c.h.b16 %v50
  %v107 = vunpack.c.l.b16 %v51
  %v108 = vunpack.c.h.b16 %v51
  %v109 = vunpack.c.l.b16 %v52
  %v110 = vunpack.c.h.b16 %v52
  %v111 = vunpack.c.l.b16 %v53
  %v112 = vunpack.c.h.b16 %v53
  %v113 = vunpack.c.l.b16 %v54
  %v114 = vunpack.c.h.b16 %v54
  %v115 = vunpack.c.l.b16 %v55
  %v116 = vunpack.c.h.b16 %v55
  %v117 = vunpack.c.l.b16 %v56
  %v118 = vunpack.c.h.b16 %v56
  %v119 = vunpack.c.l.b16 %v57
  %v120 = vunpack.c.h.b16 %v57
  %v121 = vunpack.c.l.b16 %v58
  %v122 = vunpack.c.h.b16 %v58
  %v123 = vunpack.c.l.b16 %v59
  %v124 = vunpack.c.h.b16 %v59
  %v125 = vunpack.c.l.b16 %v60
  %v126 = vunpack.c.h.b16 %v60
  %v127 = vunpack.c.l.b16 %v61
  %v128 = vunpack.c.h.b16 %v61
  %v129 = vunpack.c.l.b16 %v62
  %v130 = vunpack.c.h.b16 %v62
  %v131 = vpack.c.b16 %v103, %v99
  %v132 = vpack.c.b16 %v104, %v100
  %v133 = vpack.c.b16 %v105, %v101
  %v134 = vpack.c.b16 %v106, %v102
  %v135 = vpack.c.b16 %v111, %v107
  %v136 = vpack.c.b16 %v112, %v108
  %v137 = vpack.c.b16 %v113, %v109
  %v138 = vpack.c.b16 %v114, %v110
  %v139 = vpack.c.b16 %v119, %v115
  %v140 = vpack.c.b16 %v120, %v116
  %v141 = vpack.c.b16 %v121, %v117
  %v142 = vpack.c.b16 %v122, %v118
  %v143 = vpack.c.b16 %v127, %v123
  %v144 = vpack.c.b16 %v128, %v124
  %v145 = vpack.c.b16 %v129, %v125
  %v146 = vpack.c.b16 %v130, %v126
  %vm163 = vcmask 523264
  %v165 = vsel %vm163, %v79, 0
  %v168 = vsel %vm163, %v80, 0
  %v171 = vsel %vm163, %v81, 0
  %v174 = vsel %vm163, %v82, 0
  %176 = vmatprep.subr.bf16.mxu0 %v132
  %177 = vmatpush1.bf16.msra.mxu0 %v131
  %178 = vmatprep.subr.bf16.mxu0 %v136
  %179 = vmatpush1.bf16.msra.mxu0 %v135
  %180 = vmatprep.subr.bf16.mxu0 %v140
  %181 = vmatpush1.bf16.msra.mxu0 %v139
  %182 = vmatprep.subr.bf16.mxu0 %v144
  %183 = vmatpush1.bf16.msra.mxu0 %v143
  %184 = vmatprep.subr.bf16.mxu0 0
  %185 = vmatpush1.bf16.msra.mxu0 0
  %186 = vmatprep.subr.bf16.mxu0 0
  %187 = vmatpush1.bf16.msra.mxu0 0
  %188 = vmatprep.subr.bf16.mxu0 0
  %189 = vmatpush1.bf16.msra.mxu0 0
  %190 = vmatprep.subr.bf16.mxu0 0
  %191 = vmatpush1.bf16.msra.mxu0 0
  %192 = vmatprep.subr.bf16.mxu0 0
  %193 = vmatpush1.bf16.msra.mxu0 0
  %194 = vmatprep.subr.bf16.mxu0 0
  %195 = vmatpush1.bf16.msra.mxu0 0
  %196 = vmatprep.subr.bf16.mxu0 0
  %197 = vmatpush1.bf16.msra.mxu0 0
  %198 = vmatprep.subr.bf16.mxu0 0
  %199 = vmatpush1.bf16.msra.mxu0 0
  %200 = vmatprep.subr.bf16.mxu0 0
  %201 = vmatpush1.bf16.msra.mxu0 0
  %202 = vmatprep.subr.bf16.mxu0 0
  %203 = vmatpush1.bf16.msra.mxu0 0
  %204 = vmatprep.subr.bf16.mxu0 0
  %205 = vmatpush1.bf16.msra.mxu0 0
  %206 = vmatprep.subr.bf16.mxu0 0
  %207 = vmatpush1.bf16.msra.mxu0 0
  %208 = vmatprep.mubr.bf16.mxu0 0
  %209 = vmatmul.mubr.bf16.gmra.mrb[0].mxu0 %v165
  %v210 = vpop.f32.mrb[0].mxu0
  %v211 = vadd.f32 0.0, %v210
  %v212 = vpop.f32.mrb[0].mxu0
  %v213 = vadd.f32 0.0, %v212
  %v214 = vpop.f32.mrb[0].mxu0
  %v215 = vadd.f32 0.0, %v214
  %v216 = vpop.f32.mrb[0].mxu0
  %v217 = vadd.f32 0.0, %v216
  %218 = vmatprep.mubr.bf16.mxu0 0
  %219 = vmatmul.mubr.bf16.gmra.mrb[0].mxu0 %v168
  %v220 = vpop.f32.mrb[0].mxu0
  %v221 = vadd.f32 0.0, %v220
  %v222 = vpop.f32.mrb[0].mxu0
  %v223 = vadd.f32 0.0, %v222
  %v224 = vpop.f32.mrb[0].mxu0
  %v225 = vadd.f32 0.0, %v224
  %v226 = vpop.f32.mrb[0].mxu0
  %v227 = vadd.f32 0.0, %v226
  %228 = vmatprep.mubr.bf16.mxu0 0
  %229 = vmatmul.mubr.bf16.gmra.mrb[0].mxu0 %v171
  %v230 = vpop.f32.mrb[0].mxu0
  %v231 = vadd.f32 0.0, %v230
  %v232 = vpop.f32.mrb[0].mxu0
  %v233 = vadd.f32 0.0, %v232
  %v234 = vpop.f32.mrb[0].mxu0
  %v235 = vadd.f32 0.0, %v234
  %v236 = vpop.f32.mrb[0].mxu0
  %v237 = vadd.f32 0.0, %v236
  %238 = vmatprep.mubr.bf16.mxu0 0
  %239 = vmatmul.mubr.bf16.gmra.mrb[0].mxu0 %v174
  %v240 = vpop.f32.mrb[0].mxu0
  %v241 = vadd.f32 0.0, %v240
  %v242 = vpop.f32.mrb[0].mxu0
  %v243 = vadd.f32 0.0, %v242
  %v244 = vpop.f32.mrb[0].mxu0
  %v245 = vadd.f32 0.0, %v244
  %v246 = vpop.f32.mrb[0].mxu0
  %v247 = vadd.f32 0.0, %v246
  %248 = vdwg.mxu0
  %249 = vmatprep.subr.bf16.mxu0 %v134
  %250 = vmatpush1.bf16.msra.mxu0 %v133
  %251 = vmatprep.subr.bf16.mxu0 %v138
  %252 = vmatpush1.bf16.msra.mxu0 %v137
  %253 = vmatprep.subr.bf16.mxu0 %v142
  %254 = vmatpush1.bf16.msra.mxu0 %v141
  %255 = vmatprep.subr.bf16.mxu0 %v146
  %256 = vmatpush1.bf16.msra.mxu0 %v145
  %257 = vmatprep.subr.bf16.mxu0 0
  %258 = vmatpush1.bf16.msra.mxu0 0
  %259 = vmatprep.subr.bf16.mxu0 0
  %260 = vmatpush1.bf16.msra.mxu0 0
  %261 = vmatprep.subr.bf16.mxu0 0
  %262 = vmatpush1.bf16.msra.mxu0 0
  %263 = vmatprep.subr.bf16.mxu0 0
  %264 = vmatpush1.bf16.msra.mxu0 0
  %265 = vmatprep.subr.bf16.mxu0 0
  %266 = vmatpush1.bf16.msra.mxu0 0
  %267 = vmatprep.subr.bf16.mxu0 0
  %268 = vmatpush1.bf16.msra.mxu0 0
  %269 = vmatprep.subr.bf16.mxu0 0
  %270 = vmatpush1.bf16.msra.mxu0 0
  %271 = vmatprep.subr.bf16.mxu0 0
  %272 = vmatpush1.bf16.msra.mxu0 0
  %273 = vmatprep.subr.bf16.mxu0 0
  %274 = vmatpush1.bf16.msra.mxu0 0
  %275 = vmatprep.subr.bf16.mxu0 0
  %276 = vmatpush1.bf16.msra.mxu0 0
  %277 = vmatprep.subr.bf16.mxu0 0
  %278 = vmatpush1.bf16.msra.mxu0 0
  %279 = vmatprep.subr.bf16.mxu0 0
  %280 = vmatpush1.bf16.msra.mxu0 0
  %281 = vmatprep.mubr.bf16.mxu0 0
  %282 = vmatmul.mubr.bf16.gmra.mrb[0].mxu0 %v165
  %v283 = vpop.f32.mrb[0].mxu0
  %v284 = vadd.f32 0.0, %v283
  %v285 = vpop.f32.mrb[0].mxu0
  %v286 = vadd.f32 0.0, %v285
  %v287 = vpop.f32.mrb[0].mxu0
  %v288 = vadd.f32 0.0, %v287
  %v289 = vpop.f32.mrb[0].mxu0
  %v290 = vadd.f32 0.0, %v289
  %291 = vmatprep.mubr.bf16.mxu0 0
  %292 = vmatmul.mubr.bf16.gmra.mrb[0].mxu0 %v168
  %v293 = vpop.f32.mrb[0].mxu0
  %v294 = vadd.f32 0.0, %v293
  %v295 = vpop.f32.mrb[0].mxu0
  %v296 = vadd.f32 0.0, %v295
  %v297 = vpop.f32.mrb[0].mxu0
  %v298 = vadd.f32 0.0, %v297
  %v299 = vpop.f32.mrb[0].mxu0
  %v300 = vadd.f32 0.0, %v299
  %301 = vmatprep.mubr.bf16.mxu0 0
  %302 = vmatmul.mubr.bf16.gmra.mrb[0].mxu0 %v171
  %v303 = vpop.f32.mrb[0].mxu0
  %v304 = vadd.f32 0.0, %v303
  %v305 = vpop.f32.mrb[0].mxu0
  %v306 = vadd.f32 0.0, %v305
  %v307 = vpop.f32.mrb[0].mxu0
  %v308 = vadd.f32 0.0, %v307
  %v309 = vpop.f32.mrb[0].mxu0
  %v310 = vadd.f32 0.0, %v309
  %311 = vmatprep.mubr.bf16.mxu0 0
  %312 = vmatmul.mubr.bf16.gmra.mrb[0].mxu0 %v174
  %v313 = vpop.f32.mrb[0].mxu0
  %v314 = vadd.f32 0.0, %v313
  %v315 = vpop.f32.mrb[0].mxu0
  %v316 = vadd.f32 0.0, %v315
  %v317 = vpop.f32.mrb[0].mxu0
  %v318 = vadd.f32 0.0, %v317
  %v319 = vpop.f32.mrb[0].mxu0
  %v320 = vadd.f32 0.0, %v319
  %321 = vdwg.mxu0
  %s322 = smul.u32 0, 512
  %s323 = sshra.s32 %s322, 7
  %s324 = sand.u32 %s322, 127
  %s325 = smul.addr %s323, 8
  %s326 = scalar_lea.vmem %s4, %s325
  %327 = vst [vmem:[%s326] sm:$0xff] %v211
  %328 = vst [vmem:[%s326 + $0x8] sm:$0xff] %v213
  %329 = vst [vmem:[%s326 + $0x10] sm:$0xff] %v284
  %330 = vst [vmem:[%s326 + $0x18] sm:$0xff] %v286
  %331 = vst [vmem:[%s326 + $0x20] sm:$0xff] %v215
  %332 = vst [vmem:[%s326 + $0x28] sm:$0xff] %v217
  %333 = vst [vmem:[%s326 + $0x30] sm:$0xff] %v288
  %334 = vst [vmem:[%s326 + $0x38] sm:$0xff] %v290
  %335 = vst [vmem:[%s326 + $0x40] sm:$0xff] %v221
  %336 = vst [vmem:[%s326 + $0x48] sm:$0xff] %v223
  %337 = vst [vmem:[%s326 + $0x50] sm:$0xff] %v294
  %338 = vst [vmem:[%s326 + $0x58] sm:$0xff] %v296
  %339 = vst [vmem:[%s326 + $0x60] sm:$0xff] %v225
  %340 = vst [vmem:[%s326 + $0x68] sm:$0xff] %v227
  %341 = vst [vmem:[%s326 + $0x70] sm:$0xff] %v298
  %342 = vst [vmem:[%s326 + $0x78] sm:$0xff] %v300
  %343 = vst [vmem:[%s326 + $0x80] sm:$0xff] %v231
  %344 = vst [vmem:[%s326 + $0x88] sm:$0xff] %v233
  %345 = vst [vmem:[%s326 + $0x90] sm:$0xff] %v304
  %346 = vst [vmem:[%s326 + $0x98] sm:$0xff] %v306
  %347 = vst [vmem:[%s326 + $0xa0] sm:$0xff] %v235
  %348 = vst [vmem:[%s326 + $0xa8] sm:$0xff] %v237
  %349 = vst [vmem:[%s326 + $0xb0] sm:$0xff] %v308
  %350 = vst [vmem:[%s326 + $0xb8] sm:$0xff] %v310
  %351 = vst [vmem:[%s326 + $0xc0] sm:$0xff] %v241
  %352 = vst [vmem:[%s326 + $0xc8] sm:$0xff] %v243
  %353 = vst [vmem:[%s326 + $0xd0] sm:$0xff] %v314
  %354 = vst [vmem:[%s326 + $0xd8] sm:$0xff] %v316
  %355 = vst [vmem:[%s326 + $0xe0] sm:$0xff] %v245
  %356 = vst [vmem:[%s326 + $0xe8] sm:$0xff] %v247
  %357 = vst [vmem:[%s326 + $0xf0] sm:$0xff] %v318
  %358 = vst [vmem:[%s326 + $0xf8] sm:$0xff] %v320
  %v359 = vld [vmem:[#allocation2] sm:$0xff]
  %v360 = vld [vmem:[#allocation2 + $0x8] sm:$0xff]
  %v361 = vld [vmem:[#allocation2 + $0x10] sm:$0xff]
  %v362 = vld [vmem:[#allocation2 + $0x18] sm:$0xff]
  %v363 = vld [vmem:[#allocation2 + $0x20] sm:$0xff]
  %v364 = vld [vmem:[#allocation2 + $0x28] sm:$0xff]
  %v365 = vld [vmem:[#allocation2 + $0x30] sm:$0xff]
  %v366 = vld [vmem:[#allocation2 + $0x38] sm:$0xff]
  %v367 = vadd.f32 %v211, %v213
  %v368 = vadd.f32 %v367, %v284
  %v369 = vadd.f32 %v368, %v286
  %370 = vadd.xlane.f32.xlu0 %v369
  %v371 = vpop.xlane.xlu0 %370
  %v372 = vadd.f32 %v215, %v217
  %v373 = vadd.f32 %v372, %v288
  %v374 = vadd.f32 %v373, %v290
  %375 = vadd.xlane.f32.xlu0 %v374
  %v376 = vpop.xlane.xlu0 %375
  %v377 = vadd.f32 %v221, %v223
  %v378 = vadd.f32 %v377, %v294
  %v379 = vadd.f32 %v378, %v296
  %380 = vadd.xlane.f32.xlu0 %v379
  %v381 = vpop.xlane.xlu0 %380
  %v382 = vadd.f32 %v225, %v227
  %v383 = vadd.f32 %v382, %v298
  %v384 = vadd.f32 %v383, %v300
  %385 = vadd.xlane.f32.xlu0 %v384
  %v386 = vpop.xlane.xlu0 %385
  %v387 = vadd.f32 %v231, %v233
  %v388 = vadd.f32 %v387, %v304
  %v389 = vadd.f32 %v388, %v306
  %390 = vadd.xlane.f32.xlu0 %v389
  %v391 = vpop.xlane.xlu0 %390
  %v392 = vadd.f32 %v235, %v237
  %v393 = vadd.f32 %v392, %v308
  %v394 = vadd.f32 %v393, %v310
  %395 = vadd.xlane.f32.xlu0 %v394
  %v396 = vpop.xlane.xlu0 %395
  %v397 = vadd.f32 %v241, %v243
  %v398 = vadd.f32 %v397, %v314
  %v399 = vadd.f32 %v398, %v316
  %400 = vadd.xlane.f32.xlu0 %v399
  %v401 = vpop.xlane.xlu0 %400
  %v402 = vadd.f32 %v245, %v247
  %v403 = vadd.f32 %v402, %v318
  %v404 = vadd.f32 %v403, %v320
  %405 = vadd.xlane.f32.xlu0 %v404
  %v406 = vpop.xlane.xlu0 %405
  %v407 = vadd.f32 %v359, %v371
  %v408 = vadd.f32 %v360, %v376
  %v409 = vadd.f32 %v361, %v381
  %v410 = vadd.f32 %v362, %v386
  %v411 = vadd.f32 %v363, %v391
  %v412 = vadd.f32 %v364, %v396
  %v413 = vadd.f32 %v365, %v401
  %v414 = vadd.f32 %v366, %v406
  %vm415 = vcmask 7168
  %416 = vst.msk [vmem:[#allocation2] sm:$0xff] %vm415, %v407
  %417 = vst.msk [vmem:[#allocation2 + $0x8] sm:$0xff] %vm415, %v408
  %418 = vst.msk [vmem:[#allocation2 + $0x10] sm:$0xff] %vm415, %v409
  %419 = vst.msk [vmem:[#allocation2 + $0x18] sm:$0xff] %vm415, %v410
  %420 = vst.msk [vmem:[#allocation2 + $0x20] sm:$0xff] %vm415, %v411
  %421 = vst.msk [vmem:[#allocation2 + $0x28] sm:$0xff] %vm415, %v412
  %422 = vst.msk [vmem:[#allocation2 + $0x30] sm:$0xff] %vm415, %v413
  %423 = vst.msk [vmem:[#allocation2 + $0x38] sm:$0xff] %vm415, %v414
  %v424 = vld [vmem:[#allocation3] sm:$0xff]
  %v425 = vld [vmem:[#allocation3 + $0x8] sm:$0xff]
  %v426 = vld [vmem:[#allocation3 + $0x10] sm:$0xff]
  %v427 = vld [vmem:[#allocation3 + $0x18] sm:$0xff]
  %v428 = vld [vmem:[#allocation3 + $0x20] sm:$0xff]
  %v429 = vld [vmem:[#allocation3 + $0x28] sm:$0xff]
  %v430 = vld [vmem:[#allocation3 + $0x30] sm:$0xff]
  %v431 = vld [vmem:[#allocation3 + $0x38] sm:$0xff]
  %v432 = vmul.f32 %v211, %v211
  %v433 = vmul.f32 %v213, %v213
  %v434 = vmul.f32 %v284, %v284
  %v435 = vmul.f32 %v286, %v286
  %v436 = vmul.f32 %v215, %v215
  %v437 = vmul.f32 %v217, %v217
  %v438 = vmul.f32 %v288, %v288
  %v439 = vmul.f32 %v290, %v290
  %v440 = vmul.f32 %v221, %v221
  %v441 = vmul.f32 %v223, %v223
  %v442 = vmul.f32 %v294, %v294
  %v443 = vmul.f32 %v296, %v296
  %v444 = vmul.f32 %v225, %v225
  %v445 = vmul.f32 %v227, %v227
  %v446 = vmul.f32 %v298, %v298
  %v447 = vmul.f32 %v300, %v300
  %v448 = vmul.f32 %v231, %v231
  %v449 = vmul.f32 %v233, %v233
  %v450 = vmul.f32 %v304, %v304
  %v451 = vmul.f32 %v306, %v306
  %v452 = vmul.f32 %v235, %v235
  %v453 = vmul.f32 %v237, %v237
  %v454 = vmul.f32 %v308, %v308
  %v455 = vmul.f32 %v310, %v310
  %v456 = vmul.f32 %v241, %v241
  %v457 = vmul.f32 %v243, %v243
  %v458 = vmul.f32 %v314, %v314
  %v459 = vmul.f32 %v316, %v316
  %v460 = vmul.f32 %v245, %v245
  %v461 = vmul.f32 %v247, %v247
  %v462 = vmul.f32 %v318, %v318
  %v463 = vmul.f32 %v320, %v320
  %v464 = vadd.f32 %v432, %v433
  %v465 = vadd.f32 %v464, %v434
  %v466 = vadd.f32 %v465, %v435
  %467 = vadd.xlane.f32.xlu0 %v466
  %v468 = vpop.xlane.xlu0 %467
  %v469 = vadd.f32 %v436, %v437
  %v470 = vadd.f32 %v469, %v438
  %v471 = vadd.f32 %v470, %v439
  %472 = vadd.xlane.f32.xlu0 %v471
  %v473 = vpop.xlane.xlu0 %472
  %v474 = vadd.f32 %v440, %v441
  %v475 = vadd.f32 %v474, %v442
  %v476 = vadd.f32 %v475, %v443
  %477 = vadd.xlane.f32.xlu0 %v476
  %v478 = vpop.xlane.xlu0 %477
  %v479 = vadd.f32 %v444, %v445
  %v480 = vadd.f32 %v479, %v446
  %v481 = vadd.f32 %v480, %v447
  %482 = vadd.xlane.f32.xlu0 %v481
  %v483 = vpop.xlane.xlu0 %482
  %v484 = vadd.f32 %v448, %v449
  %v485 = vadd.f32 %v484, %v450
  %v486 = vadd.f32 %v485, %v451
  %487 = vadd.xlane.f32.xlu0 %v486
  %v488 = vpop.xlane.xlu0 %487
  %v489 = vadd.f32 %v452, %v453
  %v490 = vadd.f32 %v489, %v454
  %v491 = vadd.f32 %v490, %v455
  %492 = vadd.xlane.f32.xlu0 %v491
  %v493 = vpop.xlane.xlu0 %492
  %v494 = vadd.f32 %v456, %v457
  %v495 = vadd.f32 %v494, %v458
  %v496 = vadd.f32 %v495, %v459
  %497 = vadd.xlane.f32.xlu0 %v496
  %v498 = vpop.xlane.xlu0 %497
  %v499 = vadd.f32 %v460, %v461
  %v500 = vadd.f32 %v499, %v462
  %v501 = vadd.f32 %v500, %v463
  %502 = vadd.xlane.f32.xlu0 %v501
  %v503 = vpop.xlane.xlu0 %502
  %v504 = vadd.f32 %v424, %v468
  %v505 = vadd.f32 %v425, %v473
  %v506 = vadd.f32 %v426, %v478
  %v507 = vadd.f32 %v427, %v483
  %v508 = vadd.f32 %v428, %v488
  %v509 = vadd.f32 %v429, %v493
  %v510 = vadd.f32 %v430, %v498
  %v511 = vadd.f32 %v431, %v503
  %512 = vst.msk [vmem:[#allocation3] sm:$0xff] %vm415, %v504
  %513 = vst.msk [vmem:[#allocation3 + $0x8] sm:$0xff] %vm415, %v505
  %514 = vst.msk [vmem:[#allocation3 + $0x10] sm:$0xff] %vm415, %v506
  %515 = vst.msk [vmem:[#allocation3 + $0x18] sm:$0xff] %vm415, %v507
  %516 = vst.msk [vmem:[#allocation3 + $0x20] sm:$0xff] %vm415, %v508
  %517 = vst.msk [vmem:[#allocation3 + $0x28] sm:$0xff] %vm415, %v509
  %518 = vst.msk [vmem:[#allocation3 + $0x30] sm:$0xff] %vm415, %v510
  %519 = vst.msk [vmem:[#allocation3 + $0x38] sm:$0xff] %vm415, %v511
  // Predicated region
  $region22: #{in_conv2d_forward.1} parent=0 // pred_check
    %p520 = pneg %p18
  $region23: #{in_conv2d_forward.1} parent=0 // pred_check_branch
    %522 = sbr.rel (%p520) target = $region25
  $region24: #{in_conv2d_forward.1} parent=0 // pred_region
    %v523 = vld [vmem:[#allocation2] sm:$0xff]
    %v524 = vld [vmem:[#allocation2 + $0x8] sm:$0xff]
    %v525 = vld [vmem:[#allocation2 + $0x10] sm:$0xff]
    %v526 = vld [vmem:[#allocation2 + $0x18] sm:$0xff]
    %v527 = vld [vmem:[#allocation2 + $0x20] sm:$0xff]
    %v528 = vld [vmem:[#allocation2 + $0x28] sm:$0xff]
    %v529 = vld [vmem:[#allocation2 + $0x30] sm:$0xff]
    %v530 = vld [vmem:[#allocation2 + $0x38] sm:$0xff]
    %v531 = vmul.f32 %v523, 0.0020833334
    %v532 = vmul.f32 %v524, 0.0020833334
    %v533 = vmul.f32 %v525, 0.0020833334
    %v534 = vmul.f32 %v526, 0.0020833334
    %v535 = vmul.f32 %v527, 0.0020833334
    %v536 = vmul.f32 %v528, 0.0020833334
    %v537 = vmul.f32 %v529, 0.0020833334
    %v538 = vmul.f32 %v530, 0.0020833334
    %v539 = vld [vmem:[#allocation3] sm:$0xff]
    %v540 = vld [vmem:[#allocation3 + $0x8] sm:$0xff]
    %v541 = vld [vmem:[#allocation3 + $0x10] sm:$0xff]
    %v542 = vld [vmem:[#allocation3 + $0x18] sm:$0xff]
    %v543 = vld [vmem:[#allocation3 + $0x20] sm:$0xff]
    %v544 = vld [vmem:[#allocation3 + $0x28] sm:$0xff]
    %v545 = vld [vmem:[#allocation3 + $0x30] sm:$0xff]
    %v546 = vld [vmem:[#allocation3 + $0x38] sm:$0xff]
    %v547 = vmul.f32 %v539, 0.0020833334
    %v548 = vmul.f32 %v540, 0.0020833334
    %v549 = vmul.f32 %v541, 0.0020833334
    %v550 = vmul.f32 %v542, 0.0020833334
    %v551 = vmul.f32 %v543, 0.0020833334
    %v552 = vmul.f32 %v544, 0.0020833334
    %v553 = vmul.f32 %v545, 0.0020833334
    %v554 = vmul.f32 %v546, 0.0020833334
    %v555 = vmul.f32 %v531, %v531
    %v556 = vmul.f32 %v532, %v532
    %v557 = vmul.f32 %v533, %v533
    %v558 = vmul.f32 %v534, %v534
    %v559 = vmul.f32 %v535, %v535
    %v560 = vmul.f32 %v536, %v536
    %v561 = vmul.f32 %v537, %v537
    %v562 = vmul.f32 %v538, %v538
    %v563 = vsub.f32 %v547, %v555
    %v564 = vsub.f32 %v548, %v556
    %v565 = vsub.f32 %v549, %v557
    %v566 = vsub.f32 %v550, %v558
    %v567 = vsub.f32 %v551, %v559
    %v568 = vsub.f32 %v552, %v560
    %v569 = vsub.f32 %v553, %v561
    %v570 = vsub.f32 %v554, %v562
    %v571 = vmax.f32 %v563, 0.0
    %v572 = vmax.f32 %v564, 0.0
    %v573 = vmax.f32 %v565, 0.0
    %v574 = vmax.f32 %v566, 0.0
    %v575 = vmax.f32 %v567, 0.0
    %v576 = vmax.f32 %v568, 0.0
    %v577 = vmax.f32 %v569, 0.0
    %v578 = vmax.f32 %v570, 0.0
    %v579 = vld [vmem:[%s2] sm:$0xff]
    %v580 = vld [vmem:[%s2 + $0x8] sm:$0xff]
    %v581 = vld [vmem:[%s2 + $0x10] sm:$0xff]
    %v582 = vld [vmem:[%s2 + $0x18] sm:$0xff]
    %v583 = vld [vmem:[%s2 + $0x20] sm:$0xff]
    %v584 = vld [vmem:[%s2 + $0x28] sm:$0xff]
    %v585 = vld [vmem:[%s2 + $0x30] sm:$0xff]
    %v586 = vld [vmem:[%s2 + $0x38] sm:$0xff]
    %v587 = vadd.f32 %v571, 1e-05
    %v588 = vadd.f32 %v572, 1e-05
    %v589 = vadd.f32 %v573, 1e-05
    %v590 = vadd.f32 %v574, 1e-05
    %v591 = vadd.f32 %v575, 1e-05
    %v592 = vadd.f32 %v576, 1e-05
    %v593 = vadd.f32 %v577, 1e-05
    %v594 = vadd.f32 %v578, 1e-05
    %v595 = vrsqrt.pop %v587
    %v596 = vrsqrt.pop %v588
    %v597 = vrsqrt.pop %v589
    %v598 = vrsqrt.pop %v590
    %v599 = vrsqrt.pop %v591
    %v600 = vrsqrt.pop %v592
    %v601 = vrsqrt.pop %v593
    %v602 = vrsqrt.pop %v594
    %v603 = vmul.f32 %v579, %v595
    %v604 = vmul.f32 %v580, %v596
    %v605 = vmul.f32 %v581, %v597
    %v606 = vmul.f32 %v582, %v598
    %v607 = vmul.f32 %v583, %v599
    %v608 = vmul.f32 %v584, %v600
    %v609 = vmul.f32 %v585, %v601
    %v610 = vmul.f32 %v586, %v602
    %v611 = vld [vmem:[%s3] sm:$0xff]
    %v612 = vld [vmem:[%s3 + $0x8] sm:$0xff]
    %v613 = vld [vmem:[%s3 + $0x10] sm:$0xff]
    %v614 = vld [vmem:[%s3 + $0x18] sm:$0xff]
    %v615 = vld [vmem:[%s3 + $0x20] sm:$0xff]
    %v616 = vld [vmem:[%s3 + $0x28] sm:$0xff]
    %v617 = vld [vmem:[%s3 + $0x30] sm:$0xff]
    %v618 = vld [vmem:[%s3 + $0x38] sm:$0xff]
    %v619 = vmul.f32 %v531, %v603
    %v620 = vmul.f32 %v532, %v604
    %v621 = vmul.f32 %v533, %v605
    %v622 = vmul.f32 %v534, %v606
    %v623 = vmul.f32 %v535, %v607
    %v624 = vmul.f32 %v536, %v608
    %v625 = vmul.f32 %v537, %v609
    %v626 = vmul.f32 %v538, %v610
    %v627 = vsub.f32 %v611, %v619
    %v628 = vsub.f32 %v612, %v620
    %v629 = vsub.f32 %v613, %v621
    %v630 = vsub.f32 %v614, %v622
    %v631 = vsub.f32 %v615, %v623
    %v632 = vsub.f32 %v616, %v624
    %v633 = vsub.f32 %v617, %v625
    %v634 = vsub.f32 %v618, %v626
    %v635 = vld [vmem:[%s4] sm:$0xff]
    %v636 = vld [vmem:[%s4 + $0x8] sm:$0xff]
    %v637 = vld [vmem:[%s4 + $0x10] sm:$0xff]
    %v638 = vld [vmem:[%s4 + $0x18] sm:$0xff]
    %v639 = vld [vmem:[%s4 + $0x20] sm:$0xff]
    %v640 = vld [vmem:[%s4 + $0x28] sm:$0xff]
    %v641 = vld [vmem:[%s4 + $0x30] sm:$0xff]
    %v642 = vld [vmem:[%s4 + $0x38] sm:$0xff]
    %v643 = vld [vmem:[%s4 + $0x40] sm:$0xff]
    %v644 = vld [vmem:[%s4 + $0x48] sm:$0xff]
    %v645 = vld [vmem:[%s4 + $0x50] sm:$0xff]
    %v646 = vld [vmem:[%s4 + $0x58] sm:$0xff]
    %v647 = vld [vmem:[%s4 + $0x60] sm:$0xff]
    %v648 = vld [vmem:[%s4 + $0x68] sm:$0xff]
    %v649 = vld [vmem:[%s4 + $0x70] sm:$0xff]
    %v650 = vld [vmem:[%s4 + $0x78] sm:$0xff]
    %v651 = vld [vmem:[%s4 + $0x80] sm:$0xff]
    %v652 = vld [vmem:[%s4 + $0x88] sm:$0xff]
    %v653 = vld [vmem:[%s4 + $0x90] sm:$0xff]
    %v654 = vld [vmem:[%s4 + $0x98] sm:$0xff]
    %v655 = vld [vmem:[%s4 + $0xa0] sm:$0xff]
    %v656 = vld [vmem:[%s4 + $0xa8] sm:$0xff]
    %v657 = vld [vmem:[%s4 + $0xb0] sm:$0xff]
    %v658 = vld [vmem:[%s4 + $0xb8] sm:$0xff]
    %v659 = vld [vmem:[%s4 + $0xc0] sm:$0xff]
    %v660 = vld [vmem:[%s4 + $0xc8] sm:$0xff]
    %v661 = vld [vmem:[%s4 + $0xd0] sm:$0xff]
    %v662 = vld [vmem:[%s4 + $0xd8] sm:$0xff]
    %v663 = vld [vmem:[%s4 + $0xe0] sm:$0xff]
    %v664 = vld [vmem:[%s4 + $0xe8] sm:$0xff]
    %v665 = vld [vmem:[%s4 + $0xf0] sm:$0xff]
    %v666 = vld [vmem:[%s4 + $0xf8] sm:$0xff]
    %668 = vset.pattern.permute.xlu0 0
    %669 = vperm.xlu0 %668, %v603
    %v670 = vpop.permute.xlu0 %669
    %673 = vset.pattern.permute.xlu0 0
    %674 = vperm.xlu0 %673, %v604
    %v675 = vpop.permute.xlu0 %674
    %678 = vset.pattern.permute.xlu0 0
    %679 = vperm.xlu0 %678, %v605
    %v680 = vpop.permute.xlu0 %679
    %683 = vset.pattern.permute.xlu0 0
    %684 = vperm.xlu0 %683, %v606
    %v685 = vpop.permute.xlu0 %684
    %688 = vset.pattern.permute.xlu0 0
    %689 = vperm.xlu0 %688, %v607
    %v690 = vpop.permute.xlu0 %689
    %693 = vset.pattern.permute.xlu0 0
    %694 = vperm.xlu0 %693, %v608
    %v695 = vpop.permute.xlu0 %694
    %698 = vset.pattern.permute.xlu0 0
    %699 = vperm.xlu0 %698, %v609
    %v700 = vpop.permute.xlu0 %699
    %703 = vset.pattern.permute.xlu0 0
    %704 = vperm.xlu0 %703, %v610
    %v705 = vpop.permute.xlu0 %704
    %v707 = vmul.f32 %v635, %v670
    %v708 = vmul.f32 %v636, %v670
    %v709 = vmul.f32 %v637, %v670
    %v710 = vmul.f32 %v638, %v670
    %v711 = vmul.f32 %v639, %v675
    %v712 = vmul.f32 %v640, %v675
    %v713 = vmul.f32 %v641, %v675
    %v714 = vmul.f32 %v642, %v675
    %v715 = vmul.f32 %v643, %v680
    %v716 = vmul.f32 %v644, %v680
    %v717 = vmul.f32 %v645, %v680
    %v718 = vmul.f32 %v646, %v680
    %v719 = vmul.f32 %v647, %v685
    %v720 = vmul.f32 %v648, %v685
    %v721 = vmul.f32 %v649, %v685
    %v722 = vmul.f32 %v650, %v685
    %v723 = vmul.f32 %v651, %v690
    %v724 = vmul.f32 %v652, %v690
    %v725 = vmul.f32 %v653, %v690
    %v726 = vmul.f32 %v654, %v690
    %v727 = vmul.f32 %v655, %v695
    %v728 = vmul.f32 %v656, %v695
    %v729 = vmul.f32 %v657, %v695
    %v730 = vmul.f32 %v658, %v695
    %v731 = vmul.f32 %v659, %v700
    %v732 = vmul.f32 %v660, %v700
    %v733 = vmul.f32 %v661, %v700
    %v734 = vmul.f32 %v662, %v700
    %v735 = vmul.f32 %v663, %v705
    %v736 = vmul.f32 %v664, %v705
    %v737 = vmul.f32 %v665, %v705
    %v738 = vmul.f32 %v666, %v705
    %740 = vset.pattern.permute.xlu0 0
    %741 = vperm.xlu0 %740, %v627
    %v742 = vpop.permute.xlu0 %741
    %745 = vset.pattern.permute.xlu0 0
    %746 = vperm.xlu0 %745, %v628
    %v747 = vpop.permute.xlu0 %746
    %750 = vset.pattern.permute.xlu0 0
    %751 = vperm.xlu0 %750, %v629
    %v752 = vpop.permute.xlu0 %751
    %755 = vset.pattern.permute.xlu0 0
    %756 = vperm.xlu0 %755, %v630
    %v757 = vpop.permute.xlu0 %756
    %760 = vset.pattern.permute.xlu0 0
    %761 = vperm.xlu0 %760, %v631
    %v762 = vpop.permute.xlu0 %761
    %765 = vset.pattern.permute.xlu0 0
    %766 = vperm.xlu0 %765, %v632
    %v767 = vpop.permute.xlu0 %766
    %770 = vset.pattern.permute.xlu0 0
    %771 = vperm.xlu0 %770, %v633
    %v772 = vpop.permute.xlu0 %771
    %775 = vset.pattern.permute.xlu0 0
    %776 = vperm.xlu0 %775, %v634
    %v777 = vpop.permute.xlu0 %776
    %v779 = vadd.f32 %v707, %v742
    %v780 = vadd.f32 %v708, %v742
    %v781 = vadd.f32 %v709, %v742
    %v782 = vadd.f32 %v710, %v742
    %v783 = vadd.f32 %v711, %v747
    %v784 = vadd.f32 %v712, %v747
    %v785 = vadd.f32 %v713, %v747
    %v786 = vadd.f32 %v714, %v747
    %v787 = vadd.f32 %v715, %v752
    %v788 = vadd.f32 %v716, %v752
    %v789 = vadd.f32 %v717, %v752
    %v790 = vadd.f32 %v718, %v752
    %v791 = vadd.f32 %v719, %v757
    %v792 = vadd.f32 %v720, %v757
    %v793 = vadd.f32 %v721, %v757
    %v794 = vadd.f32 %v722, %v757
    %v795 = vadd.f32 %v723, %v762
    %v796 = vadd.f32 %v724, %v762
    %v797 = vadd.f32 %v725, %v762
    %v798 = vadd.f32 %v726, %v762
    %v799 = vadd.f32 %v727, %v767
    %v800 = vadd.f32 %v728, %v767
    %v801 = vadd.f32 %v729, %v767
    %v802 = vadd.f32 %v730, %v767
    %v803 = vadd.f32 %v731, %v772
    %v804 = vadd.f32 %v732, %v772
    %v805 = vadd.f32 %v733, %v772
    %v806 = vadd.f32 %v734, %v772
    %v807 = vadd.f32 %v735, %v777
    %v808 = vadd.f32 %v736, %v777
    %v809 = vadd.f32 %v737, %v777
    %v810 = vadd.f32 %v738, %v777
    %v811 = vmax.f32 %v779, 0.0
    %v812 = vmax.f32 %v780, 0.0
    %v813 = vmax.f32 %v781, 0.0
    %v814 = vmax.f32 %v782, 0.0
    %v815 = vmax.f32 %v783, 0.0
    %v816 = vmax.f32 %v784, 0.0
    %v817 = vmax.f32 %v785, 0.0
    %v818 = vmax.f32 %v786, 0.0
    %v819 = vmax.f32 %v787, 0.0
    %v820 = vmax.f32 %v788, 0.0
    %v821 = vmax.f32 %v789, 0.0
    %v822 = vmax.f32 %v790, 0.0
    %v823 = vmax.f32 %v791, 0.0
    %v824 = vmax.f32 %v792, 0.0
    %v825 = vmax.f32 %v793, 0.0
    %v826 = vmax.f32 %v794, 0.0
    %v827 = vmax.f32 %v795, 0.0
    %v828 = vmax.f32 %v796, 0.0
    %v829 = vmax.f32 %v797, 0.0
    %v830 = vmax.f32 %v798, 0.0
    %v831 = vmax.f32 %v799, 0.0
    %v832 = vmax.f32 %v800, 0.0
    %v833 = vmax.f32 %v801, 0.0
    %v834 = vmax.f32 %v802, 0.0
    %v835 = vmax.f32 %v803, 0.0
    %v836 = vmax.f32 %v804, 0.0
    %v837 = vmax.f32 %v805, 0.0
    %v838 = vmax.f32 %v806, 0.0
    %v839 = vmax.f32 %v807, 0.0
    %v840 = vmax.f32 %v808, 0.0
    %v841 = vmax.f32 %v809, 0.0
    %v842 = vmax.f32 %v810, 0.0
    %843 = vst [vmem:[%s4] sm:$0xff] %v811
    %844 = vst [vmem:[%s4 + $0x8] sm:$0xff] %v812
    %845 = vst [vmem:[%s4 + $0x10] sm:$0xff] %v813
    %846 = vst [vmem:[%s4 + $0x18] sm:$0xff] %v814
    %847 = vst [vmem:[%s4 + $0x20] sm:$0xff] %v815
    %848 = vst [vmem:[%s4 + $0x28] sm:$0xff] %v816
    %849 = vst [vmem:[%s4 + $0x30] sm:$0xff] %v817
    %850 = vst [vmem:[%s4 + $0x38] sm:$0xff] %v818
    %851 = vst [vmem:[%s4 + $0x40] sm:$0xff] %v819
    %852 = vst [vmem:[%s4 + $0x48] sm:$0xff] %v820
    %853 = vst [vmem:[%s4 + $0x50] sm:$0xff] %v821
    %854 = vst [vmem:[%s4 + $0x58] sm:$0xff] %v822
    %855 = vst [vmem:[%s4 + $0x60] sm:$0xff] %v823
    %856 = vst [vmem:[%s4 + $0x68] sm:$0xff] %v824
    %857 = vst [vmem:[%s4 + $0x70] sm:$0xff] %v825
    %858 = vst [vmem:[%s4 + $0x78] sm:$0xff] %v826
    %859 = vst [vmem:[%s4 + $0x80] sm:$0xff] %v827
    %860 = vst [vmem:[%s4 + $0x88] sm:$0xff] %v828
    %861 = vst [vmem:[%s4 + $0x90] sm:$0xff] %v829
    %862 = vst [vmem:[%s4 + $0x98] sm:$0xff] %v830
    %863 = vst [vmem:[%s4 + $0xa0] sm:$0xff] %v831
    %864 = vst [vmem:[%s4 + $0xa8] sm:$0xff] %v832
    %865 = vst [vmem:[%s4 + $0xb0] sm:$0xff] %v833
    %866 = vst [vmem:[%s4 + $0xb8] sm:$0xff] %v834
    %867 = vst [vmem:[%s4 + $0xc0] sm:$0xff] %v835
    %868 = vst [vmem:[%s4 + $0xc8] sm:$0xff] %v836
    %869 = vst [vmem:[%s4 + $0xd0] sm:$0xff] %v837
    %870 = vst [vmem:[%s4 + $0xd8] sm:$0xff] %v838
    %871 = vst [vmem:[%s4 + $0xe0] sm:$0xff] %v839
    %872 = vst [vmem:[%s4 + $0xe8] sm:$0xff] %v840
    %873 = vst [vmem:[%s4 + $0xf0] sm:$0xff] %v841
    %874 = vst [vmem:[%s4 + $0xf8] sm:$0xff] %v842
  $region25: #{in_conv2d_forward.1} parent=0 // pred_fallthru
    _
  // Predicated region
  $region26: #{in_conv2d_forward.1} parent=0 // pred_check
    _
  $region27: #{in_conv2d_forward.1} parent=0 // pred_check_branch
    %876 = sbr.rel (0) target = $region29
  $region28: #{in_conv2d_forward.1} parent=0 // pred_region
    _
  $region29: #{in_conv2d_forward.1} parent=0 // pred_fallthru
    _
  // Predicated region
  $region30: #{in_conv2d_forward.1} parent=0 // pred_check
    _
  $region31: #{in_conv2d_forward.1} parent=0 // pred_check_branch
    %878 = sbr.rel (0) target = $region33
  $region32: #{in_conv2d_forward.1} parent=0 // pred_region
    _
  $region33: #{in_conv2d_forward.1} parent=0 // pred_fallthru
    _

</llo_original>
